<compile_context>
chip_gen: v7x
topology: tpu7x:2x2x1
jax: 0.10.0
libtpu: 0.0.40
codegen_flags: <defaults>
</compile_context>

<pallas_src>
import jax
import jax.numpy as jnp
import numpy as np
from jax.experimental import pallas as pl
from jax.experimental.pallas import tpu as pltpu


def make_sage_kernel(in_feats, hid_feats):
    """Build the fused feature-major kernel; returns (kernel_fn, packed_row_count)."""
    H = hid_feats
    L = 2 * H                               # slab lane width (fused K for layers 2/3)
    assert H % 8 == 0, "hid_feats must be a multiple of 8 (sublane grain)"
    assert in_feats % 8 == 0, "in_feats must be a multiple of 8 (sublane grain)"
    assert 2 * in_feats <= L
    K1 = 2 * in_feats                       # fused contraction dim of layer 1

    # Static 8-row-aligned block offsets into the packed parameter slab (rows x L lanes).
    o_w1, o_w2, o_w3 = 0, H, 2 * H          # fused [Ws_l^T | Wn_l^T] blocks, (H, 2F) each
    o_wl1 = 3 * H                           # lin1 weight^T   (H, H)
    o_bias = 4 * H                          # bias columns    (H, L): cols 0..3 = b1,b2,b3,bl1
    o_misc = 5 * H                          # misc block (8, L): row0[:H]=wl2 row, row1[0]=bl2
    n_rows = 5 * H + 8

    def kernel(at_ref, x_ref, p_ref, out_ref):
        # at_ref : (Np, Np) bf16  A_norm^T  (src on sublanes, dst on lanes)
        # x_ref  : (in_feats, Np) f32       feature-major node features
        # p_ref  : (n_rows, L)    f32       packed parameter slab
        # out_ref: (1, Np)        f32       lane-dense per-node output row
        a_t = at_ref[...]
        bias_blk = p_ref[o_bias:o_bias + H, :]          # (H, L)
        misc = p_ref[o_misc:o_misc + 8, :]              # (8, L)

        def sage_layer(h, wt_fused, b_col):
            # DGL SAGEConv 'mean' + edge_weight, feature-major:
            #   neigh_fm = H_fm @ A_norm^T
            #   out_fm   = [Ws^T | Wn^T] @ [H_fm ; neigh_fm]  + b  (sublane stack), relu
            neigh = jnp.dot(h.astype(jnp.bfloat16), a_t,
                            preferred_element_type=jnp.float32)
            hn = jnp.concatenate([h, neigh], axis=0)     # (2F, Np) sublane stack
            out = jnp.dot(wt_fused, hn, preferred_element_type=jnp.float32) + b_col
            return jnp.maximum(out, 0.0)                 # F.relu

        h = x_ref[...]                                   # (in_feats, Np)
        h = sage_layer(h, p_ref[o_w1:o_w1 + H, 0:K1], bias_blk[:, 0:1])
        h = sage_layer(h, p_ref[o_w2:o_w2 + H, :],    bias_blk[:, 1:2])
        h = sage_layer(h, p_ref[o_w3:o_w3 + H, :],    bias_blk[:, 2:3])

        # lin1 + relu:  Wl1^T @ h + bl1
        h = jnp.maximum(
            jnp.dot(p_ref[o_wl1:o_wl1 + H, 0:H], h,
                    preferred_element_type=jnp.float32) + bias_blk[:, 3:4],
            0.0)

        # lin2 (out_feats == 1): plain (1,H) @ (H,Np) row matmul, lane-dense store
        out_ref[...] = (
            jnp.dot(misc[0:1, 0:H], h, preferred_element_type=jnp.float32)
            + misc[1:2, 0:1])

    return kernel, n_rows


def pack_params(params, in_feats, hid_feats):
    """Pack the 13 parameter tensors (pre-transposed) into one (5*hid+8, 2*hid) f32 slab."""
    (ws1, wn1, b1, ws2, wn2, b2, ws3, wn3, b3, wl1, bl1, wl2, bl2) = params
    H = hid_feats
    L = 2 * H

    def pad_lanes(m):
        m = m.astype(jnp.float32)
        return jnp.pad(m, ((0, 0), (0, L - m.shape[1])))

    w1t = pad_lanes(jnp.concatenate([ws1.T, wn1.T], axis=1))   # (H, 2*in) -> (H, L)
    w2t = pad_lanes(jnp.concatenate([ws2.T, wn2.T], axis=1))   # (H, 2H) == (H, L)
    w3t = pad_lanes(jnp.concatenate([ws3.T, wn3.T], axis=1))
    wl1t = pad_lanes(wl1.T)                                    # (H, H) -> (H, L)

    bias_blk = jnp.zeros((H, L), jnp.float32)                  # biases as columns
    bias_blk = bias_blk.at[:, 0].set(b1[0])
    bias_blk = bias_blk.at[:, 1].set(b2[0])
    bias_blk = bias_blk.at[:, 2].set(b3[0])
    bias_blk = bias_blk.at[:, 3].set(bl1[0])

    misc = jnp.zeros((8, L), jnp.float32)
    misc = misc.at[0, :H].set(wl2[0])                          # lin2 weight as a row
    misc = misc.at[1, 0].set(bl2[0, 0])                        # lin2 bias scalar

    packed = jnp.concatenate([w1t, w2t, w3t, wl1t, bias_blk, misc], axis=0)
    assert packed.shape == (5 * H + 8, L), packed.shape
    return packed


def _pick_vmem_limit(footprint_bytes):
    """Generation-aware VMEM limit: footprint-driven, capped below physical capacity."""
    cap = 128 * 1024 * 1024
    try:
        info = pltpu.get_tpu_info()
        cap = int(getattr(info, "vmem_capacity_bytes", cap) or cap)
    except Exception:
        pass
    headroom = 16 * 1024 * 1024            # double-buffer / compiler-scratch headroom
    want = 2 * int(footprint_bytes) + 8 * 1024 * 1024
    return int(max(16 * 1024 * 1024, min(want, cap - headroom)))


def sage_model_forward(a_norm, x, packed, in_feats, hid_feats):
    N = x.shape[0]
    H = hid_feats
    Np = max(128, ((N + 127) // 128) * 128)            # pad nodes to a lane multiple

    # Feature-major, lane-padded inputs (cheap one-shot XLA ops in the wrapper).
    x_fm = jnp.zeros((in_feats, Np), jnp.float32).at[:, :N].set(jnp.transpose(x))
    a_t = jnp.zeros((Np, Np), jnp.bfloat16).at[:N, :N].set(
        jnp.transpose(a_norm).astype(jnp.bfloat16))

    kernel, n_rows = make_sage_kernel(in_feats, hid_feats)
    assert packed.shape == (n_rows, 2 * H), packed.shape

    # Advisory cost estimate for the XLA scheduler.
    flops = 0
    for f in (in_feats, H, H):
        flops += 2 * Np * Np * f                       # aggregation H_fm @ A^T
        flops += 2 * H * (2 * f) * Np                  # fused self+neigh weight matmul
    flops += 2 * H * H * Np                            # lin1
    flops += 2 * H * Np                                # lin2
    bytes_accessed = 2 * a_t.size + 4 * (x_fm.size + packed.size + Np)

    # VMEM footprint: resident inputs/output + a few live (2H, Np) f32 activations.
    footprint = (2 * a_t.size + 4 * x_fm.size + 4 * packed.size + 4 * Np
                 + 4 * 4 * (2 * H) * Np)

    out = pl.pallas_call(
        kernel,
        out_shape=jax.ShapeDtypeStruct((1, Np), jnp.float32),    # lane-dense output row
        in_specs=[pl.BlockSpec(memory_space=pltpu.MemorySpace.VMEM)] * 3,
        out_specs=pl.BlockSpec(memory_space=pltpu.MemorySpace.VMEM),
        compiler_params=pltpu.CompilerParams(
            vmem_limit_bytes=_pick_vmem_limit(footprint)),
        cost_estimate=pl.CostEstimate(flops=int(flops), transcendentals=0,
                                      bytes_accessed=int(bytes_accessed)),
    )(a_t, x_fm, packed)

    # torch: lin2(H).squeeze() -> (N,) ; drop the lane padding.
    return out[0, :N]


def reference_forward(a_norm, x, params):
    (ws1, wn1, b1, ws2, wn2, b2, ws3, wn3, b3, wl1, bl1, wl2, bl2) = params
    h = x
    for ws, wn, b in ((ws1, wn1, b1), (ws2, wn2, b2), (ws3, wn3, b3)):
        h = jnp.maximum(h @ ws + (a_norm @ h) @ wn + b, 0.0)
    h = jnp.maximum(h @ wl1 + bl1, 0.0)
    return jnp.squeeze(jnp.sum(h * wl2, axis=-1, keepdims=True) + bl2)


if __name__ == "__main__":
    N         = 16   # number of graph nodes
    E         = 48   # number of edges
    in_feats  = 8
    hid_feats = 32
    out_feats = 1    # .squeeze() in the reference implies scalar per-node output

    key = jax.random.PRNGKey(0)
    ks = jax.random.split(key, 16)

    # ---- deterministic synthetic graph + inputs --------------------------------
    src = jax.random.randint(ks[0], (E,), 0, N)
    dst = jax.random.randint(ks[1], (E,), 0, N)
    ew  = jax.random.uniform(ks[2], (E,), jnp.float32, 0.1, 1.0)   # edge weights
    x   = jax.random.normal(ks[3], (N, in_feats), jnp.float32)

    # dense weighted adjacency A[dst, src] = ew ; 'mean' over in-edges -> / in-degree
    A   = jnp.zeros((N, N), jnp.float32).at[dst, src].add(ew)
    deg = jnp.zeros((N,), jnp.float32).at[dst].add(1.0)
    a_norm = A / jnp.maximum(deg, 1.0)[:, None]

    # ---- deterministic parameters (weights stored as [in, out]) ---------------
    def lin_w(k, fan_in, fan_out):
        return (jax.random.normal(k, (fan_in, fan_out), jnp.float32)
                / jnp.sqrt(jnp.float32(fan_in)))

    params = (
        # SAGEConv1: fc_self, fc_neigh, bias
        lin_w(ks[4], in_feats, hid_feats),  lin_w(ks[5], in_feats, hid_feats),
        0.01 * jax.random.normal(ks[6], (1, hid_feats), jnp.float32),
        # SAGEConv2
        lin_w(ks[7], hid_feats, hid_feats), lin_w(ks[8], hid_feats, hid_feats),
        0.01 * jax.random.normal(ks[9], (1, hid_feats), jnp.float32),
        # SAGEConv3
        lin_w(ks[10], hid_feats, hid_feats), lin_w(ks[11], hid_feats, hid_feats),
        0.01 * jax.random.normal(ks[12], (1, hid_feats), jnp.float32),
        # lin1
        lin_w(ks[13], hid_feats, hid_feats),
        0.01 * jax.random.normal(ks[14], (1, hid_feats), jnp.float32),
        # lin2 (out_feats == 1): weight row (1, hid), bias (1, 1)
        lin_w(ks[15], hid_feats, out_feats).reshape(1, hid_feats),
        jnp.zeros((1, 1), jnp.float32),
    )

    packed = pack_params(params, in_feats, hid_feats)

    out = jax.block_until_ready(
        sage_model_forward(a_norm, x, packed, in_feats, hid_feats))
    ref = jax.block_until_ready(reference_forward(a_norm, x, params))

    assert out.shape == (N,), out.shape
    # bf16 aggregation of A_norm -> looser tolerance than the pure-f32 version.
    np.testing.assert_allclose(np.asarray(out), np.asarray(ref), rtol=2e-2, atol=2e-2)
    print("KERNEL_OK")
</pallas_src>

<mosaic_0001>
module attributes {stable_mosaic.version = 11 : i64} {
  func.func @kernel(%arg0: memref<128x128xbf16, #tpu.memory_space<vmem>>, %arg1: memref<8x128xf32, #tpu.memory_space<vmem>>, %arg2: memref<168x64xf32, #tpu.memory_space<vmem>>, %arg3: memref<1x128xf32, #tpu.memory_space<vmem>>) attributes {dimension_semantics = [], scalar_prefetch = 0 : i64, scratch_operands = 0 : i64, tpu.core_type = #tpu.core_type<tc>} {
    %c0 = arith.constant 0 : index
    %c0_0 = arith.constant 0 : index
    %0 = vector.load %arg0[%c0, %c0_0] : memref<128x128xbf16, #tpu.memory_space<vmem>>, vector<128x128xbf16>
    %c128 = arith.constant 128 : index
    %c0_1 = arith.constant 0 : index
    %1 = vector.load %arg2[%c128, %c0_1] : memref<168x64xf32, #tpu.memory_space<vmem>>, vector<32x64xf32>
    %c160 = arith.constant 160 : index
    %c0_2 = arith.constant 0 : index
    %2 = vector.load %arg2[%c160, %c0_2] : memref<168x64xf32, #tpu.memory_space<vmem>>, vector<8x64xf32>
    %c0_3 = arith.constant 0 : index
    %c0_4 = arith.constant 0 : index
    %3 = vector.load %arg1[%c0_3, %c0_4] : memref<8x128xf32, #tpu.memory_space<vmem>>, vector<8x128xf32>
    %c0_5 = arith.constant 0 : index
    %c0_6 = arith.constant 0 : index
    %4 = vector.load %arg2[%c0_5, %c0_6] : memref<168x64xf32, #tpu.memory_space<vmem>>, vector<32x16xf32>
    %5 = vector.extract_strided_slice %1 {offsets = [0, 0], sizes = [32, 1], strides = [1, 1]} : vector<32x64xf32> to vector<32x1xf32>
    %6 = arith.truncf %3 : vector<8x128xf32> to vector<8x128xbf16>
    %cst = arith.constant dense<0.000000e+00> : vector<8x128xf32>
    %7 = tpu.matmul %6, %0, %cst {dimension_numbers = #tpu.dot_dimension_numbers<[1], [0], [0], [1], [0, 0, 1, 1], [], []>} : vector<8x128xbf16>, vector<128x128xbf16>, vector<8x128xf32> -> vector<8x128xf32>
    %8 = tpu.concatenate %3, %7 in 0 : vector<8x128xf32>, vector<8x128xf32> -> vector<16x128xf32>
    %cst_7 = arith.constant dense<0.000000e+00> : vector<32x128xf32>
    %9 = tpu.matmul %4, %8, %cst_7 {dimension_numbers = #tpu.dot_dimension_numbers<[1], [0], [0], [1], [0, 0, 1, 1], [], []>} : vector<32x16xf32>, vector<16x128xf32>, vector<32x128xf32> -> vector<32x128xf32>
    %10 = vector.broadcast %5 : vector<32x1xf32> to vector<32x128xf32>
    %11 = arith.addf %9, %10 : vector<32x128xf32>
    %cst_8 = arith.constant 0.000000e+00 : f32
    %12 = vector.broadcast %cst_8 : f32 to vector<32x128xf32>
    %13 = arith.maximumf %11, %12 : vector<32x128xf32>
    %c32 = arith.constant 32 : index
    %c0_9 = arith.constant 0 : index
    %14 = vector.load %arg2[%c32, %c0_9] : memref<168x64xf32, #tpu.memory_space<vmem>>, vector<32x64xf32>
    %15 = vector.extract_strided_slice %1 {offsets = [0, 1], sizes = [32, 1], strides = [1, 1]} : vector<32x64xf32> to vector<32x1xf32>
    %16 = arith.truncf %13 : vector<32x128xf32> to vector<32x128xbf16>
    %cst_10 = arith.constant dense<0.000000e+00> : vector<32x128xf32>
    %17 = tpu.matmul %16, %0, %cst_10 {dimension_numbers = #tpu.dot_dimension_numbers<[1], [0], [0], [1], [0, 0, 1, 1], [], []>} : vector<32x128xbf16>, vector<128x128xbf16>, vector<32x128xf32> -> vector<32x128xf32>
    %18 = tpu.concatenate %13, %17 in 0 : vector<32x128xf32>, vector<32x128xf32> -> vector<64x128xf32>
    %cst_11 = arith.constant dense<0.000000e+00> : vector<32x128xf32>
    %19 = tpu.matmul %14, %18, %cst_11 {dimension_numbers = #tpu.dot_dimension_numbers<[1], [0], [0], [1], [0, 0, 1, 1], [], []>} : vector<32x64xf32>, vector<64x128xf32>, vector<32x128xf32> -> vector<32x128xf32>
    %20 = vector.broadcast %15 : vector<32x1xf32> to vector<32x128xf32>
    %21 = arith.addf %19, %20 : vector<32x128xf32>
    %cst_12 = arith.constant 0.000000e+00 : f32
    %22 = vector.broadcast %cst_12 : f32 to vector<32x128xf32>
    %23 = arith.maximumf %21, %22 : vector<32x128xf32>
    %c64 = arith.constant 64 : index
    %c0_13 = arith.constant 0 : index
    %24 = vector.load %arg2[%c64, %c0_13] : memref<168x64xf32, #tpu.memory_space<vmem>>, vector<32x64xf32>
    %25 = vector.extract_strided_slice %1 {offsets = [0, 2], sizes = [32, 1], strides = [1, 1]} : vector<32x64xf32> to vector<32x1xf32>
    %26 = arith.truncf %23 : vector<32x128xf32> to vector<32x128xbf16>
    %cst_14 = arith.constant dense<0.000000e+00> : vector<32x128xf32>
    %27 = tpu.matmul %26, %0, %cst_14 {dimension_numbers = #tpu.dot_dimension_numbers<[1], [0], [0], [1], [0, 0, 1, 1], [], []>} : vector<32x128xbf16>, vector<128x128xbf16>, vector<32x128xf32> -> vector<32x128xf32>
    %28 = tpu.concatenate %23, %27 in 0 : vector<32x128xf32>, vector<32x128xf32> -> vector<64x128xf32>
    %cst_15 = arith.constant dense<0.000000e+00> : vector<32x128xf32>
    %29 = tpu.matmul %24, %28, %cst_15 {dimension_numbers = #tpu.dot_dimension_numbers<[1], [0], [0], [1], [0, 0, 1, 1], [], []>} : vector<32x64xf32>, vector<64x128xf32>, vector<32x128xf32> -> vector<32x128xf32>
    %30 = vector.broadcast %25 : vector<32x1xf32> to vector<32x128xf32>
    %31 = arith.addf %29, %30 : vector<32x128xf32>
    %cst_16 = arith.constant 0.000000e+00 : f32
    %32 = vector.broadcast %cst_16 : f32 to vector<32x128xf32>
    %33 = arith.maximumf %31, %32 : vector<32x128xf32>
    %c96 = arith.constant 96 : index
    %c0_17 = arith.constant 0 : index
    %34 = vector.load %arg2[%c96, %c0_17] : memref<168x64xf32, #tpu.memory_space<vmem>>, vector<32x32xf32>
    %cst_18 = arith.constant dense<0.000000e+00> : vector<32x128xf32>
    %35 = tpu.matmul %34, %33, %cst_18 {dimension_numbers = #tpu.dot_dimension_numbers<[1], [0], [0], [1], [0, 0, 1, 1], [], []>} : vector<32x32xf32>, vector<32x128xf32>, vector<32x128xf32> -> vector<32x128xf32>
    %36 = vector.extract_strided_slice %1 {offsets = [0, 3], sizes = [32, 1], strides = [1, 1]} : vector<32x64xf32> to vector<32x1xf32>
    %37 = vector.broadcast %36 : vector<32x1xf32> to vector<32x128xf32>
    %38 = arith.addf %35, %37 : vector<32x128xf32>
    %cst_19 = arith.constant 0.000000e+00 : f32
    %39 = vector.broadcast %cst_19 : f32 to vector<32x128xf32>
    %40 = arith.maximumf %38, %39 : vector<32x128xf32>
    %41 = vector.extract_strided_slice %2 {offsets = [0, 0], sizes = [1, 32], strides = [1, 1]} : vector<8x64xf32> to vector<1x32xf32>
    %cst_20 = arith.constant dense<0.000000e+00> : vector<1x128xf32>
    %42 = tpu.matmul %41, %40, %cst_20 {dimension_numbers = #tpu.dot_dimension_numbers<[1], [0], [0], [1], [0, 0, 1, 1], [], []>} : vector<1x32xf32>, vector<32x128xf32>, vector<1x128xf32> -> vector<1x128xf32>
    %43 = vector.extract_strided_slice %2 {offsets = [1, 0], sizes = [1, 1], strides = [1, 1]} : vector<8x64xf32> to vector<1x1xf32>
    %44 = vector.broadcast %43 : vector<1x1xf32> to vector<1x128xf32>
    %45 = arith.addf %42, %44 : vector<1x128xf32>
    %c0_21 = arith.constant 0 : index
    %c0_22 = arith.constant 0 : index
    %46 = vector.load %arg3[%c0_21, %c0_22] : memref<1x128xf32, #tpu.memory_space<vmem>>, vector<1x128xf32>
    tpu.vector_store %arg3[%c0_21, %c0_22], %45 {strides = array<i32>} : memref<1x128xf32, #tpu.memory_space<vmem>>, vector<1x128xf32>,
    return
  }
}

</mosaic_0001>

<llo_original>
// kernel: tpu_custom_call.1
$region0: #{tpu_custom_call.1}
  #allocation0 [shape = 'u32[]', space=smem, size = 0x4, offset = 0x4, fixed_abs, tag = 'smem constant byte address 0x4 - core index']
  #allocation1 [shape = 'u32[144,128]{1,0:T(1,128)}', space=vmem, size = 0x12000, scoped, tag = 'internal scratch']
  %s0 = inlined_call_operand.vmem [shape: bf16[128,128], index: 0, kind: input, shape index: {}]
  %s1 = inlined_call_operand.vmem [shape: f32[8,128], index: 1, kind: input, shape index: {}]
  %s2 = inlined_call_operand.vmem [shape: f32[168,64], index: 2, kind: input, shape index: {}]
  %s3 = inlined_call_operand.hbm [shape: f32[1,128], index: 3, kind: output, shape index: {}]
  %s4 = sld [smem:[#allocation0]]
  $region22: #{tpu_custom_call.1} parent=0
    _
  %s6 = ssub.s32 1, %s4
  %s7 = scalar_select 0, %s6, %s4
  $region1: #{tpu_custom_call.1} parent=0
    #allocation2 [shape = 'u8[512]{0}', space=vmem, size = 0x400, scoped, tag = 'output window, operand 0, single buffered']
    #allocation3 [shape = 's32[1]{0}', space=sflag, size = 0x4, scoped, tag = 'scoped memory for tpu_custom_call.1']
    %8 = vsyncpa [#allocation3], 0
    // Predicated region
    $region2: #{tpu_custom_call.1} parent=1 // pred_check
      _
    $region3: #{tpu_custom_call.1} parent=1 // pred_check_branch
      %10 = sbr.rel (0) target = $region5
    $region4: #{tpu_custom_call.1} parent=1 // pred_region
      _
    $region5: #{tpu_custom_call.1} parent=1 // pred_fallthru
      _
    // Predicated region
    $region6: #{tpu_custom_call.1} parent=1 // pred_check
      _
    $region7: #{tpu_custom_call.1} parent=1 // pred_check_branch
      %12 = sbr.rel (0) target = $region9
    $region8: #{tpu_custom_call.1} parent=1 // pred_region
      _
    $region9: #{tpu_custom_call.1} parent=1 // pred_fallthru
      _
    // Predicated region
    $region10: #{tpu_custom_call.1} parent=1 // pred_check
      _
    $region11: #{tpu_custom_call.1} parent=1 // pred_check_branch
      %14 = sbr.rel (0) target = $region13
    $region12: #{tpu_custom_call.1} parent=1 // pred_region
      _
    $region13: #{tpu_custom_call.1} parent=1 // pred_fallthru
      _
    %v16 = vld [vmem:[%s0] sm:$0xf]
    %v17 = vld [vmem:[%s0 + $0x4] sm:$0xf]
    %v18 = vld [vmem:[%s0 + $0x8] sm:$0xf]
    %v19 = vld [vmem:[%s0 + $0xc] sm:$0xf]
    %v20 = vld [vmem:[%s0 + $0x10] sm:$0xf]
    %v21 = vld [vmem:[%s0 + $0x14] sm:$0xf]
    %v22 = vld [vmem:[%s0 + $0x18] sm:$0xf]
    %v23 = vld [vmem:[%s0 + $0x1c] sm:$0xf]
    %v24 = vld [vmem:[%s0 + $0x20] sm:$0xf]
    %v25 = vld [vmem:[%s0 + $0x24] sm:$0xf]
    %v26 = vld [vmem:[%s0 + $0x28] sm:$0xf]
    %v27 = vld [vmem:[%s0 + $0x2c] sm:$0xf]
    %v28 = vld [vmem:[%s0 + $0x30] sm:$0xf]
    %v29 = vld [vmem:[%s0 + $0x34] sm:$0xf]
    %v30 = vld [vmem:[%s0 + $0x38] sm:$0xf]
    %v31 = vld [vmem:[%s0 + $0x3c] sm:$0xf]
    %v32 = vld [vmem:[%s2 + $0x80] sm:$0xff]
    %v33 = vld [vmem:[%s2 + $0x88] sm:$0xff]
    %v34 = vld [vmem:[%s2 + $0x90] sm:$0xff]
    %v35 = vld [vmem:[%s2 + $0x98] sm:$0xff]
    %v36 = vld [vmem:[%s2 + $0xa0] sm:$0xff]
    %v37 = vld [vmem:[%s1] sm:$0xff]
    %v38 = vld [vmem:[%s2] sm:$0xff]
    %v39 = vld [vmem:[%s2 + $0x8] sm:$0xff]
    %v40 = vld [vmem:[%s2 + $0x10] sm:$0xff]
    %v41 = vld [vmem:[%s2 + $0x18] sm:$0xff]
    %v42 = vpack.c.bf16 %v37, %v37
    %v59 = vunpack.c.l.b16 %v16
    %v60 = vunpack.c.l.b16 %v17
    %v61 = vunpack.c.l.b16 %v18
    %v62 = vunpack.c.l.b16 %v19
    %v63 = vunpack.c.l.b16 %v20
    %v64 = vunpack.c.l.b16 %v21
    %v65 = vunpack.c.l.b16 %v22
    %v66 = vunpack.c.l.b16 %v23
    %v67 = vunpack.c.l.b16 %v24
    %v68 = vunpack.c.l.b16 %v25
    %v69 = vunpack.c.l.b16 %v26
    %v70 = vunpack.c.l.b16 %v27
    %v71 = vunpack.c.l.b16 %v28
    %v72 = vunpack.c.l.b16 %v29
    %v73 = vunpack.c.l.b16 %v30
    %v74 = vunpack.c.l.b16 %v31
    %v75 = vpack.c.b16 %v60, %v59
    %v76 = vpack.c.b16 %v62, %v61
    %v77 = vpack.c.b16 %v64, %v63
    %v78 = vpack.c.b16 %v66, %v65
    %v79 = vpack.c.b16 %v68, %v67
    %v80 = vpack.c.b16 %v70, %v69
    %v81 = vpack.c.b16 %v72, %v71
    %v82 = vpack.c.b16 %v74, %v73
    %91 = vmatprep.subr.bf16.mxu0 0
    %92 = vmatpush1.bf16.msra.mxu0 %v75
    %93 = vmatprep.subr.bf16.mxu0 0
    %94 = vmatpush1.bf16.msra.mxu0 %v76
    %95 = vmatprep.subr.bf16.mxu0 0
    %96 = vmatpush1.bf16.msra.mxu0 %v77
    %97 = vmatprep.subr.bf16.mxu0 0
    %98 = vmatpush1.bf16.msra.mxu0 %v78
    %99 = vmatprep.subr.bf16.mxu0 0
    %100 = vmatpush1.bf16.msra.mxu0 %v79
    %101 = vmatprep.subr.bf16.mxu0 0
    %102 = vmatpush1.bf16.msra.mxu0 %v80
    %103 = vmatprep.subr.bf16.mxu0 0
    %104 = vmatpush1.bf16.msra.mxu0 %v81
    %105 = vmatprep.subr.bf16.mxu0 0
    %106 = vmatpush1.bf16.msra.mxu0 %v82
    %107 = vmatprep.subr.bf16.mxu0 0
    %108 = vmatpush1.bf16.msra.mxu0 0
    %109 = vmatprep.subr.bf16.mxu0 0
    %110 = vmatpush1.bf16.msra.mxu0 0
    %111 = vmatprep.subr.bf16.mxu0 0
    %112 = vmatpush1.bf16.msra.mxu0 0
    %113 = vmatprep.subr.bf16.mxu0 0
    %114 = vmatpush1.bf16.msra.mxu0 0
    %115 = vmatprep.subr.bf16.mxu0 0
    %116 = vmatpush1.bf16.msra.mxu0 0
    %117 = vmatprep.subr.bf16.mxu0 0
    %118 = vmatpush1.bf16.msra.mxu0 0
    %119 = vmatprep.subr.bf16.mxu0 0
    %120 = vmatpush1.bf16.msra.mxu0 0
    %121 = vmatprep.subr.bf16.mxu0 0
    %122 = vmatpush1.bf16.msra.mxu0 0
    %123 = vmatprep.mubr.bf16.mxu0 0
    %124 = vmatmul.mubr.bf16.gmra.mrb[0].mxu0 %v42
    %v125 = vpop.f32.mrb[0].mxu0
    %v126 = vadd.f32 0.0, %v125
    %v127 = vpop.f32.mrb[0].mxu0
    %v128 = vpop.f32.mrb[0].mxu0
    %v129 = vpop.f32.mrb[0].mxu0
    %130 = vdwg.mxu0
    %132 = vset.pattern.permute.xlu0 0
    %133 = vperm.xlu0 %132, %v32
    %v134 = vpop.permute.xlu0 %133
    %137 = vset.pattern.permute.xlu0 0
    %138 = vperm.xlu0 %137, %v33
    %v139 = vpop.permute.xlu0 %138
    %142 = vset.pattern.permute.xlu0 0
    %143 = vperm.xlu0 %142, %v34
    %v144 = vpop.permute.xlu0 %143
    %147 = vset.pattern.permute.xlu0 0
    %148 = vperm.xlu0 %147, %v35
    %v149 = vpop.permute.xlu0 %148
    %vm151 = vcmask 130048
    %v153 = vsel %vm151, %v38, 0
    %v156 = vsel %vm151, %v39, 0
    %v159 = vsel %vm151, %v40, 0
    %v162 = vsel %vm151, %v41, 0
    %164 = vmatprep.subr.mxu0 0.0
    %165 = vmatpush1.msra.mxu0 %v37
    %166 = vmatprep.subr.mxu0 0.0
    %167 = vmatpush1.msra.mxu0 %v126
    %168 = vmatprep.subr.mxu0 0.0
    %169 = vmatpush1.msra.mxu0 0.0
    %170 = vmatprep.subr.mxu0 0.0
    %171 = vmatpush1.msra.mxu0 0.0
    %172 = vmatprep.subr.mxu0 0.0
    %173 = vmatpush1.msra.mxu0 0.0
    %174 = vmatprep.subr.mxu0 0.0
    %175 = vmatpush1.msra.mxu0 0.0
    %176 = vmatprep.subr.mxu0 0.0
    %177 = vmatpush1.msra.mxu0 0.0
    %178 = vmatprep.subr.mxu0 0.0
    %179 = vmatpush1.msra.mxu0 0.0
    %180 = vmatprep.subr.mxu0 0.0
    %181 = vmatpush1.msra.mxu0 0.0
    %182 = vmatprep.subr.mxu0 0.0
    %183 = vmatpush1.msra.mxu0 0.0
    %184 = vmatprep.subr.mxu0 0.0
    %185 = vmatpush1.msra.mxu0 0.0
    %186 = vmatprep.subr.mxu0 0.0
    %187 = vmatpush1.msra.mxu0 0.0
    %188 = vmatprep.subr.mxu0 0.0
    %189 = vmatpush1.msra.mxu0 0.0
    %190 = vmatprep.subr.mxu0 0.0
    %191 = vmatpush1.msra.mxu0 0.0
    %192 = vmatprep.subr.mxu0 0.0
    %193 = vmatpush1.msra.mxu0 0.0
    %194 = vmatprep.subr.mxu0 0.0
    %195 = vmatpush1.msra.mxu0 0.0
    %196 = vmatprep.subr.mxu0 0.0
    %197 = vmatpush1.msra.mxu0 0.0
    %198 = vmatprep.subr.mxu0 0.0
    %199 = vmatpush1.msra.mxu0 0.0
    %200 = vmatprep.subr.mxu0 0.0
    %201 = vmatpush1.msra.mxu0 0.0
    %202 = vmatprep.subr.mxu0 0.0
    %203 = vmatpush1.msra.mxu0 0.0
    %204 = vmatprep.subr.mxu0 0.0
    %205 = vmatpush1.msra.mxu0 0.0
    %206 = vmatprep.subr.mxu0 0.0
    %207 = vmatpush1.msra.mxu0 0.0
    %208 = vmatprep.subr.mxu0 0.0
    %209 = vmatpush1.msra.mxu0 0.0
    %210 = vmatprep.subr.mxu0 0.0
    %211 = vmatpush1.msra.mxu0 0.0
    %212 = vmatprep.subr.mxu0 0.0
    %213 = vmatpush1.msra.mxu0 0.0
    %214 = vmatprep.subr.mxu0 0.0
    %215 = vmatpush1.msra.mxu0 0.0
    %216 = vmatprep.subr.mxu0 0.0
    %217 = vmatpush1.msra.mxu0 0.0
    %218 = vmatprep.subr.mxu0 0.0
    %219 = vmatpush1.msra.mxu0 0.0
    %220 = vmatprep.subr.mxu0 0.0
    %221 = vmatpush1.msra.mxu0 0.0
    %222 = vmatprep.subr.mxu0 0.0
    %223 = vmatpush1.msra.mxu0 0.0
    %224 = vmatprep.subr.mxu0 0.0
    %225 = vmatpush1.msra.mxu0 0.0
    %226 = vmatprep.subr.mxu0 0.0
    %227 = vmatpush1.msra.mxu0 0.0
    %228 = vmatprep.mubr.f32.mxu0 0.0
    %229 = vmatmul.mubr.f32.gmra.mrb[0].mxu0 %v153
    %v230 = vpop.f32.mrb[0].mxu0
    %v231 = vadd.f32 %v134, %v230
    %v232 = vpop.f32.mrb[0].mxu0
    %233 = vmatprep.mubr.f32.mxu0 0.0
    %234 = vmatmul.mubr.f32.gmra.mrb[0].mxu0 %v156
    %v235 = vpop.f32.mrb[0].mxu0
    %v236 = vadd.f32 %v139, %v235
    %v237 = vpop.f32.mrb[0].mxu0
    %238 = vmatprep.mubr.f32.mxu0 0.0
    %239 = vmatmul.mubr.f32.gmra.mrb[0].mxu0 %v159
    %v240 = vpop.f32.mrb[0].mxu0
    %v241 = vadd.f32 %v144, %v240
    %v242 = vpop.f32.mrb[0].mxu0
    %243 = vmatprep.mubr.f32.mxu0 0.0
    %244 = vmatmul.mubr.f32.gmra.mrb[0].mxu0 %v162
    %v245 = vpop.f32.mrb[0].mxu0
    %v246 = vadd.f32 %v149, %v245
    %v247 = vpop.f32.mrb[0].mxu0
    %248 = vdwg.mxu0
    %v249 = vmax.f32 %v231, 0.0
    %v250 = vmax.f32 %v236, 0.0
    %v251 = vmax.f32 %v241, 0.0
    %v252 = vmax.f32 %v246, 0.0
    %v253 = vld [vmem:[%s2 + $0x20] sm:$0xff]
    %v254 = vld [vmem:[%s2 + $0x28] sm:$0xff]
    %v255 = vld [vmem:[%s2 + $0x30] sm:$0xff]
    %v256 = vld [vmem:[%s2 + $0x38] sm:$0xff]
    %v257 = vpack.c.bf16 %v250, %v249
    %v258 = vpack.c.bf16 %v252, %v251
    %259 = vmatprep.subr.bf16.mxu0 0
    %260 = vmatpush1.bf16.msra.mxu0 %v75
    %261 = vmatprep.subr.bf16.mxu0 0
    %262 = vmatpush1.bf16.msra.mxu0 %v76
    %263 = vmatprep.subr.bf16.mxu0 0
    %264 = vmatpush1.bf16.msra.mxu0 %v77
    %265 = vmatprep.subr.bf16.mxu0 0
    %266 = vmatpush1.bf16.msra.mxu0 %v78
    %267 = vmatprep.subr.bf16.mxu0 0
    %268 = vmatpush1.bf16.msra.mxu0 %v79
    %269 = vmatprep.subr.bf16.mxu0 0
    %270 = vmatpush1.bf16.msra.mxu0 %v80
    %271 = vmatprep.subr.bf16.mxu0 0
    %272 = vmatpush1.bf16.msra.mxu0 %v81
    %273 = vmatprep.subr.bf16.mxu0 0
    %274 = vmatpush1.bf16.msra.mxu0 %v82
    %275 = vmatprep.subr.bf16.mxu0 0
    %276 = vmatpush1.bf16.msra.mxu0 0
    %277 = vmatprep.subr.bf16.mxu0 0
    %278 = vmatpush1.bf16.msra.mxu0 0
    %279 = vmatprep.subr.bf16.mxu0 0
    %280 = vmatpush1.bf16.msra.mxu0 0
    %281 = vmatprep.subr.bf16.mxu0 0
    %282 = vmatpush1.bf16.msra.mxu0 0
    %283 = vmatprep.subr.bf16.mxu0 0
    %284 = vmatpush1.bf16.msra.mxu0 0
    %285 = vmatprep.subr.bf16.mxu0 0
    %286 = vmatpush1.bf16.msra.mxu0 0
    %287 = vmatprep.subr.bf16.mxu0 0
    %288 = vmatpush1.bf16.msra.mxu0 0
    %289 = vmatprep.subr.bf16.mxu0 0
    %290 = vmatpush1.bf16.msra.mxu0 0
    %291 = vmatprep.mubr.bf16.mxu0 0
    %292 = vmatmul.mubr.bf16.gmra.mrb[0].mxu0 %v257
    %v293 = vpop.f32.mrb[0].mxu0
    %v294 = vadd.f32 0.0, %v293
    %v295 = vpop.f32.mrb[0].mxu0
    %v296 = vpop.f32.mrb[0].mxu0
    %v297 = vadd.f32 0.0, %v296
    %v298 = vpop.f32.mrb[0].mxu0
    %299 = vmatprep.mubr.bf16.mxu0 0
    %300 = vmatmul.mubr.bf16.gmra.mrb[0].mxu0 %v258
    %v301 = vpop.f32.mrb[0].mxu0
    %v302 = vadd.f32 0.0, %v301
    %v303 = vpop.f32.mrb[0].mxu0
    %v304 = vpop.f32.mrb[0].mxu0
    %v305 = vadd.f32 0.0, %v304
    %v306 = vpop.f32.mrb[0].mxu0
    %307 = vdwg.mxu0
    %308 = vset.pattern.permute.xlu0 1
    %309 = vperm.xlu0 %308, %v32
    %v310 = vpop.permute.xlu0 %309
    %312 = vset.pattern.permute.xlu0 1
    %313 = vperm.xlu0 %312, %v33
    %v314 = vpop.permute.xlu0 %313
    %316 = vset.pattern.permute.xlu0 1
    %317 = vperm.xlu0 %316, %v34
    %v318 = vpop.permute.xlu0 %317
    %320 = vset.pattern.permute.xlu0 1
    %321 = vperm.xlu0 %320, %v35
    %v322 = vpop.permute.xlu0 %321
    %vm324 = vcmask 523264
    %v326 = vsel %vm324, %v253, 0
    %v329 = vsel %vm324, %v254, 0
    %v332 = vsel %vm324, %v255, 0
    %v335 = vsel %vm324, %v256, 0
    %337 = vmatprep.subr.mxu0 0.0
    %338 = vmatpush1.msra.mxu0 %v249
    %339 = vmatprep.subr.mxu0 0.0
    %340 = vmatpush1.msra.mxu0 %v250
    %341 = vmatprep.subr.mxu0 0.0
    %342 = vmatpush1.msra.mxu0 %v251
    %343 = vmatprep.subr.mxu0 0.0
    %344 = vmatpush1.msra.mxu0 %v252
    %345 = vmatprep.subr.mxu0 0.0
    %346 = vmatpush1.msra.mxu0 %v294
    %347 = vmatprep.subr.mxu0 0.0
    %348 = vmatpush1.msra.mxu0 %v297
    %349 = vmatprep.subr.mxu0 0.0
    %350 = vmatpush1.msra.mxu0 %v302
    %351 = vmatprep.subr.mxu0 0.0
    %352 = vmatpush1.msra.mxu0 %v305
    %353 = vmatprep.subr.mxu0 0.0
    %354 = vmatpush1.msra.mxu0 0.0
    %355 = vmatprep.subr.mxu0 0.0
    %356 = vmatpush1.msra.mxu0 0.0
    %357 = vmatprep.subr.mxu0 0.0
    %358 = vmatpush1.msra.mxu0 0.0
    %359 = vmatprep.subr.mxu0 0.0
    %360 = vmatpush1.msra.mxu0 0.0
    %361 = vmatprep.subr.mxu0 0.0
    %362 = vmatpush1.msra.mxu0 0.0
    %363 = vmatprep.subr.mxu0 0.0
    %364 = vmatpush1.msra.mxu0 0.0
    %365 = vmatprep.subr.mxu0 0.0
    %366 = vmatpush1.msra.mxu0 0.0
    %367 = vmatprep.subr.mxu0 0.0
    %368 = vmatpush1.msra.mxu0 0.0
    %369 = vmatprep.subr.mxu0 0.0
    %370 = vmatpush1.msra.mxu0 0.0
    %371 = vmatprep.subr.mxu0 0.0
    %372 = vmatpush1.msra.mxu0 0.0
    %373 = vmatprep.subr.mxu0 0.0
    %374 = vmatpush1.msra.mxu0 0.0
    %375 = vmatprep.subr.mxu0 0.0
    %376 = vmatpush1.msra.mxu0 0.0
    %377 = vmatprep.subr.mxu0 0.0
    %378 = vmatpush1.msra.mxu0 0.0
    %379 = vmatprep.subr.mxu0 0.0
    %380 = vmatpush1.msra.mxu0 0.0
    %381 = vmatprep.subr.mxu0 0.0
    %382 = vmatpush1.msra.mxu0 0.0
    %383 = vmatprep.subr.mxu0 0.0
    %384 = vmatpush1.msra.mxu0 0.0
    %385 = vmatprep.subr.mxu0 0.0
    %386 = vmatpush1.msra.mxu0 0.0
    %387 = vmatprep.subr.mxu0 0.0
    %388 = vmatpush1.msra.mxu0 0.0
    %389 = vmatprep.subr.mxu0 0.0
    %390 = vmatpush1.msra.mxu0 0.0
    %391 = vmatprep.subr.mxu0 0.0
    %392 = vmatpush1.msra.mxu0 0.0
    %393 = vmatprep.subr.mxu0 0.0
    %394 = vmatpush1.msra.mxu0 0.0
    %395 = vmatprep.subr.mxu0 0.0
    %396 = vmatpush1.msra.mxu0 0.0
    %397 = vmatprep.subr.mxu0 0.0
    %398 = vmatpush1.msra.mxu0 0.0
    %399 = vmatprep.subr.mxu0 0.0
    %400 = vmatpush1.msra.mxu0 0.0
    %401 = vmatprep.mubr.f32.mxu0 0.0
    %402 = vmatmul.mubr.f32.gmra.mrb[0].mxu0 %v326
    %v403 = vpop.f32.mrb[0].mxu0
    %v404 = vadd.f32 %v310, %v403
    %v405 = vpop.f32.mrb[0].mxu0
    %406 = vmatprep.mubr.f32.mxu0 0.0
    %407 = vmatmul.mubr.f32.gmra.mrb[0].mxu0 %v329
    %v408 = vpop.f32.mrb[0].mxu0
    %v409 = vadd.f32 %v314, %v408
    %v410 = vpop.f32.mrb[0].mxu0
    %411 = vmatprep.mubr.f32.mxu0 0.0
    %412 = vmatmul.mubr.f32.gmra.mrb[0].mxu0 %v332
    %v413 = vpop.f32.mrb[0].mxu0
    %v414 = vadd.f32 %v318, %v413
    %v415 = vpop.f32.mrb[0].mxu0
    %416 = vmatprep.mubr.f32.mxu0 0.0
    %417 = vmatmul.mubr.f32.gmra.mrb[0].mxu0 %v335
    %v418 = vpop.f32.mrb[0].mxu0
    %v419 = vadd.f32 %v322, %v418
    %v420 = vpop.f32.mrb[0].mxu0
    %421 = vdwg.mxu0
    %v422 = vmax.f32 %v404, 0.0
    %v423 = vmax.f32 %v409, 0.0
    %v424 = vmax.f32 %v414, 0.0
    %v425 = vmax.f32 %v419, 0.0
    %v426 = vld [vmem:[%s2 + $0x40] sm:$0xff]
    %v427 = vld [vmem:[%s2 + $0x48] sm:$0xff]
    %v428 = vld [vmem:[%s2 + $0x50] sm:$0xff]
    %v429 = vld [vmem:[%s2 + $0x58] sm:$0xff]
    %v430 = vpack.c.bf16 %v423, %v422
    %v431 = vpack.c.bf16 %v425, %v424
    %432 = vmatprep.subr.bf16.mxu0 0
    %433 = vmatpush1.bf16.msra.mxu0 %v75
    %434 = vmatprep.subr.bf16.mxu0 0
    %435 = vmatpush1.bf16.msra.mxu0 %v76
    %436 = vmatprep.subr.bf16.mxu0 0
    %437 = vmatpush1.bf16.msra.mxu0 %v77
    %438 = vmatprep.subr.bf16.mxu0 0
    %439 = vmatpush1.bf16.msra.mxu0 %v78
    %440 = vmatprep.subr.bf16.mxu0 0
    %441 = vmatpush1.bf16.msra.mxu0 %v79
    %442 = vmatprep.subr.bf16.mxu0 0
    %443 = vmatpush1.bf16.msra.mxu0 %v80
    %444 = vmatprep.subr.bf16.mxu0 0
    %445 = vmatpush1.bf16.msra.mxu0 %v81
    %446 = vmatprep.subr.bf16.mxu0 0
    %447 = vmatpush1.bf16.msra.mxu0 %v82
    %448 = vmatprep.subr.bf16.mxu0 0
    %449 = vmatpush1.bf16.msra.mxu0 0
    %450 = vmatprep.subr.bf16.mxu0 0
    %451 = vmatpush1.bf16.msra.mxu0 0
    %452 = vmatprep.subr.bf16.mxu0 0
    %453 = vmatpush1.bf16.msra.mxu0 0
    %454 = vmatprep.subr.bf16.mxu0 0
    %455 = vmatpush1.bf16.msra.mxu0 0
    %456 = vmatprep.subr.bf16.mxu0 0
    %457 = vmatpush1.bf16.msra.mxu0 0
    %458 = vmatprep.subr.bf16.mxu0 0
    %459 = vmatpush1.bf16.msra.mxu0 0
    %460 = vmatprep.subr.bf16.mxu0 0
    %461 = vmatpush1.bf16.msra.mxu0 0
    %462 = vmatprep.subr.bf16.mxu0 0
    %463 = vmatpush1.bf16.msra.mxu0 0
    %464 = vmatprep.mubr.bf16.mxu0 0
    %465 = vmatmul.mubr.bf16.gmra.mrb[0].mxu0 %v430
    %v466 = vpop.f32.mrb[0].mxu0
    %v467 = vadd.f32 0.0, %v466
    %v468 = vpop.f32.mrb[0].mxu0
    %v469 = vpop.f32.mrb[0].mxu0
    %v470 = vadd.f32 0.0, %v469
    %v471 = vpop.f32.mrb[0].mxu0
    %472 = vmatprep.mubr.bf16.mxu0 0
    %473 = vmatmul.mubr.bf16.gmra.mrb[0].mxu0 %v431
    %v474 = vpop.f32.mrb[0].mxu0
    %v475 = vadd.f32 0.0, %v474
    %v476 = vpop.f32.mrb[0].mxu0
    %v477 = vpop.f32.mrb[0].mxu0
    %v478 = vadd.f32 0.0, %v477
    %v479 = vpop.f32.mrb[0].mxu0
    %480 = vdwg.mxu0
    %481 = vset.pattern.permute.xlu0 2
    %482 = vperm.xlu0 %481, %v32
    %v483 = vpop.permute.xlu0 %482
    %485 = vset.pattern.permute.xlu0 2
    %486 = vperm.xlu0 %485, %v33
    %v487 = vpop.permute.xlu0 %486
    %489 = vset.pattern.permute.xlu0 2
    %490 = vperm.xlu0 %489, %v34
    %v491 = vpop.permute.xlu0 %490
    %493 = vset.pattern.permute.xlu0 2
    %494 = vperm.xlu0 %493, %v35
    %v495 = vpop.permute.xlu0 %494
    %v498 = vsel %vm324, %v426, 0
    %v501 = vsel %vm324, %v427, 0
    %v504 = vsel %vm324, %v428, 0
    %v507 = vsel %vm324, %v429, 0
    %509 = vmatprep.subr.mxu0 0.0
    %510 = vmatpush1.msra.mxu0 %v422
    %511 = vmatprep.subr.mxu0 0.0
    %512 = vmatpush1.msra.mxu0 %v423
    %513 = vmatprep.subr.mxu0 0.0
    %514 = vmatpush1.msra.mxu0 %v424
    %515 = vmatprep.subr.mxu0 0.0
    %516 = vmatpush1.msra.mxu0 %v425
    %517 = vmatprep.subr.mxu0 0.0
    %518 = vmatpush1.msra.mxu0 %v467
    %519 = vmatprep.subr.mxu0 0.0
    %520 = vmatpush1.msra.mxu0 %v470
    %521 = vmatprep.subr.mxu0 0.0
    %522 = vmatpush1.msra.mxu0 %v475
    %523 = vmatprep.subr.mxu0 0.0
    %524 = vmatpush1.msra.mxu0 %v478
    %525 = vmatprep.subr.mxu0 0.0
    %526 = vmatpush1.msra.mxu0 0.0
    %527 = vmatprep.subr.mxu0 0.0
    %528 = vmatpush1.msra.mxu0 0.0
    %529 = vmatprep.subr.mxu0 0.0
    %530 = vmatpush1.msra.mxu0 0.0
    %531 = vmatprep.subr.mxu0 0.0
    %532 = vmatpush1.msra.mxu0 0.0
    %533 = vmatprep.subr.mxu0 0.0
    %534 = vmatpush1.msra.mxu0 0.0
    %535 = vmatprep.subr.mxu0 0.0
    %536 = vmatpush1.msra.mxu0 0.0
    %537 = vmatprep.subr.mxu0 0.0
    %538 = vmatpush1.msra.mxu0 0.0
    %539 = vmatprep.subr.mxu0 0.0
    %540 = vmatpush1.msra.mxu0 0.0
    %541 = vmatprep.subr.mxu0 0.0
    %542 = vmatpush1.msra.mxu0 0.0
    %543 = vmatprep.subr.mxu0 0.0
    %544 = vmatpush1.msra.mxu0 0.0
    %545 = vmatprep.subr.mxu0 0.0
    %546 = vmatpush1.msra.mxu0 0.0
    %547 = vmatprep.subr.mxu0 0.0
    %548 = vmatpush1.msra.mxu0 0.0
    %549 = vmatprep.subr.mxu0 0.0
    %550 = vmatpush1.msra.mxu0 0.0
    %551 = vmatprep.subr.mxu0 0.0
    %552 = vmatpush1.msra.mxu0 0.0
    %553 = vmatprep.subr.mxu0 0.0
    %554 = vmatpush1.msra.mxu0 0.0
    %555 = vmatprep.subr.mxu0 0.0
    %556 = vmatpush1.msra.mxu0 0.0
    %557 = vmatprep.subr.mxu0 0.0
    %558 = vmatpush1.msra.mxu0 0.0
    %559 = vmatprep.subr.mxu0 0.0
    %560 = vmatpush1.msra.mxu0 0.0
    %561 = vmatprep.subr.mxu0 0.0
    %562 = vmatpush1.msra.mxu0 0.0
    %563 = vmatprep.subr.mxu0 0.0
    %564 = vmatpush1.msra.mxu0 0.0
    %565 = vmatprep.subr.mxu0 0.0
    %566 = vmatpush1.msra.mxu0 0.0
    %567 = vmatprep.subr.mxu0 0.0
    %568 = vmatpush1.msra.mxu0 0.0
    %569 = vmatprep.subr.mxu0 0.0
    %570 = vmatpush1.msra.mxu0 0.0
    %571 = vmatprep.subr.mxu0 0.0
    %572 = vmatpush1.msra.mxu0 0.0
    %573 = vmatprep.mubr.f32.mxu0 0.0
    %574 = vmatmul.mubr.f32.gmra.mrb[0].mxu0 %v498
    %v575 = vpop.f32.mrb[0].mxu0
    %v576 = vadd.f32 %v483, %v575
    %v577 = vpop.f32.mrb[0].mxu0
    %578 = vmatprep.mubr.f32.mxu0 0.0
    %579 = vmatmul.mubr.f32.gmra.mrb[0].mxu0 %v501
    %v580 = vpop.f32.mrb[0].mxu0
    %v581 = vadd.f32 %v487, %v580
    %v582 = vpop.f32.mrb[0].mxu0
    %583 = vmatprep.mubr.f32.mxu0 0.0
    %584 = vmatmul.mubr.f32.gmra.mrb[0].mxu0 %v504
    %v585 = vpop.f32.mrb[0].mxu0
    %v586 = vadd.f32 %v491, %v585
    %v587 = vpop.f32.mrb[0].mxu0
    %588 = vmatprep.mubr.f32.mxu0 0.0
    %589 = vmatmul.mubr.f32.gmra.mrb[0].mxu0 %v507
    %v590 = vpop.f32.mrb[0].mxu0
    %v591 = vadd.f32 %v495, %v590
    %v592 = vpop.f32.mrb[0].mxu0
    %593 = vdwg.mxu0
    %v594 = vmax.f32 %v576, 0.0
    %v595 = vmax.f32 %v581, 0.0
    %v596 = vmax.f32 %v586, 0.0
    %v597 = vmax.f32 %v591, 0.0
    %v598 = vld [vmem:[%s2 + $0x60] sm:$0xff]
    %v599 = vld [vmem:[%s2 + $0x68] sm:$0xff]
    %v600 = vld [vmem:[%s2 + $0x70] sm:$0xff]
    %v601 = vld [vmem:[%s2 + $0x78] sm:$0xff]
    %602 = vset.pattern.permute.xlu0 3
    %603 = vperm.xlu0 %602, %v32
    %v604 = vpop.permute.xlu0 %603
    %606 = vset.pattern.permute.xlu0 3
    %607 = vperm.xlu0 %606, %v33
    %v608 = vpop.permute.xlu0 %607
    %610 = vset.pattern.permute.xlu0 3
    %611 = vperm.xlu0 %610, %v34
    %v612 = vpop.permute.xlu0 %611
    %614 = vset.pattern.permute.xlu0 3
    %615 = vperm.xlu0 %614, %v35
    %v616 = vpop.permute.xlu0 %615
    %vm618 = vcmask 261120
    %v620 = vsel %vm618, %v598, 0
    %v623 = vsel %vm618, %v599, 0
    %v626 = vsel %vm618, %v600, 0
    %v629 = vsel %vm618, %v601, 0
    %631 = vmatprep.subr.mxu0 0.0
    %632 = vmatpush1.msra.mxu0 %v594
    %633 = vmatprep.subr.mxu0 0.0
    %634 = vmatpush1.msra.mxu0 %v595
    %635 = vmatprep.subr.mxu0 0.0
    %636 = vmatpush1.msra.mxu0 %v596
    %637 = vmatprep.subr.mxu0 0.0
    %638 = vmatpush1.msra.mxu0 %v597
    %639 = vmatprep.subr.mxu0 0.0
    %640 = vmatpush1.msra.mxu0 0.0
    %641 = vmatprep.subr.mxu0 0.0
    %642 = vmatpush1.msra.mxu0 0.0
    %643 = vmatprep.subr.mxu0 0.0
    %644 = vmatpush1.msra.mxu0 0.0
    %645 = vmatprep.subr.mxu0 0.0
    %646 = vmatpush1.msra.mxu0 0.0
    %647 = vmatprep.subr.mxu0 0.0
    %648 = vmatpush1.msra.mxu0 0.0
    %649 = vmatprep.subr.mxu0 0.0
    %650 = vmatpush1.msra.mxu0 0.0
    %651 = vmatprep.subr.mxu0 0.0
    %652 = vmatpush1.msra.mxu0 0.0
    %653 = vmatprep.subr.mxu0 0.0
    %654 = vmatpush1.msra.mxu0 0.0
    %655 = vmatprep.subr.mxu0 0.0
    %656 = vmatpush1.msra.mxu0 0.0
    %657 = vmatprep.subr.mxu0 0.0
    %658 = vmatpush1.msra.mxu0 0.0
    %659 = vmatprep.subr.mxu0 0.0
    %660 = vmatpush1.msra.mxu0 0.0
    %661 = vmatprep.subr.mxu0 0.0
    %662 = vmatpush1.msra.mxu0 0.0
    %663 = vmatprep.subr.mxu0 0.0
    %664 = vmatpush1.msra.mxu0 0.0
    %665 = vmatprep.subr.mxu0 0.0
    %666 = vmatpush1.msra.mxu0 0.0
    %667 = vmatprep.subr.mxu0 0.0
    %668 = vmatpush1.msra.mxu0 0.0
    %669 = vmatprep.subr.mxu0 0.0
    %670 = vmatpush1.msra.mxu0 0.0
    %671 = vmatprep.subr.mxu0 0.0
    %672 = vmatpush1.msra.mxu0 0.0
    %673 = vmatprep.subr.mxu0 0.0
    %674 = vmatpush1.msra.mxu0 0.0
    %675 = vmatprep.subr.mxu0 0.0
    %676 = vmatpush1.msra.mxu0 0.0
    %677 = vmatprep.subr.mxu0 0.0
    %678 = vmatpush1.msra.mxu0 0.0
    %679 = vmatprep.subr.mxu0 0.0
    %680 = vmatpush1.msra.mxu0 0.0
    %681 = vmatprep.subr.mxu0 0.0
    %682 = vmatpush1.msra.mxu0 0.0
    %683 = vmatprep.subr.mxu0 0.0
    %684 = vmatpush1.msra.mxu0 0.0
    %685 = vmatprep.subr.mxu0 0.0
    %686 = vmatpush1.msra.mxu0 0.0
    %687 = vmatprep.subr.mxu0 0.0
    %688 = vmatpush1.msra.mxu0 0.0
    %689 = vmatprep.subr.mxu0 0.0
    %690 = vmatpush1.msra.mxu0 0.0
    %691 = vmatprep.subr.mxu0 0.0
    %692 = vmatpush1.msra.mxu0 0.0
    %693 = vmatprep.subr.mxu0 0.0
    %694 = vmatpush1.msra.mxu0 0.0
    %695 = vmatprep.mubr.f32.mxu0 0.0
    %696 = vmatmul.mubr.f32.gmra.mrb[0].mxu0 %v620
    %v697 = vpop.f32.mrb[0].mxu0
    %v698 = vadd.f32 %v604, %v697
    %v699 = vpop.f32.mrb[0].mxu0
    %700 = vmatprep.mubr.f32.mxu0 0.0
    %701 = vmatmul.mubr.f32.gmra.mrb[0].mxu0 %v623
    %v702 = vpop.f32.mrb[0].mxu0
    %v703 = vadd.f32 %v608, %v702
    %v704 = vpop.f32.mrb[0].mxu0
    %705 = vmatprep.mubr.f32.mxu0 0.0
    %706 = vmatmul.mubr.f32.gmra.mrb[0].mxu0 %v626
    %v707 = vpop.f32.mrb[0].mxu0
    %v708 = vadd.f32 %v612, %v707
    %v709 = vpop.f32.mrb[0].mxu0
    %710 = vmatprep.mubr.f32.mxu0 0.0
    %711 = vmatmul.mubr.f32.gmra.mrb[0].mxu0 %v629
    %v712 = vpop.f32.mrb[0].mxu0
    %v713 = vadd.f32 %v616, %v712
    %v714 = vpop.f32.mrb[0].mxu0
    %715 = vdwg.mxu0
    %v716 = vmax.f32 %v698, 0.0
    %v717 = vmax.f32 %v703, 0.0
    %v718 = vmax.f32 %v708, 0.0
    %v719 = vmax.f32 %v713, 0.0
    %721 = vset.pattern.permute.xlu0 0
    %722 = vperm.xlu0 %721, %v36
    %v723 = vpop.permute.xlu0 %722
    %v724 = vrot.slane %v723, 1
    %v726 = vsel %vm618, %v36, 0
    %728 = vmatprep.subr.mxu0 0.0
    %729 = vmatpush1.msra.mxu0 %v716
    %730 = vmatprep.subr.mxu0 0.0
    %731 = vmatpush1.msra.mxu0 %v717
    %732 = vmatprep.subr.mxu0 0.0
    %733 = vmatpush1.msra.mxu0 %v718
    %734 = vmatprep.subr.mxu0 0.0
    %735 = vmatpush1.msra.mxu0 %v719
    %736 = vmatprep.subr.mxu0 0.0
    %737 = vmatpush1.msra.mxu0 0.0
    %738 = vmatprep.subr.mxu0 0.0
    %739 = vmatpush1.msra.mxu0 0.0
    %740 = vmatprep.subr.mxu0 0.0
    %741 = vmatpush1.msra.mxu0 0.0
    %742 = vmatprep.subr.mxu0 0.0
    %743 = vmatpush1.msra.mxu0 0.0
    %744 = vmatprep.subr.mxu0 0.0
    %745 = vmatpush1.msra.mxu0 0.0
    %746 = vmatprep.subr.mxu0 0.0
    %747 = vmatpush1.msra.mxu0 0.0
    %748 = vmatprep.subr.mxu0 0.0
    %749 = vmatpush1.msra.mxu0 0.0
    %750 = vmatprep.subr.mxu0 0.0
    %751 = vmatpush1.msra.mxu0 0.0
    %752 = vmatprep.subr.mxu0 0.0
    %753 = vmatpush1.msra.mxu0 0.0
    %754 = vmatprep.subr.mxu0 0.0
    %755 = vmatpush1.msra.mxu0 0.0
    %756 = vmatprep.subr.mxu0 0.0
    %757 = vmatpush1.msra.mxu0 0.0
    %758 = vmatprep.subr.mxu0 0.0
    %759 = vmatpush1.msra.mxu0 0.0
    %760 = vmatprep.subr.mxu0 0.0
    %761 = vmatpush1.msra.mxu0 0.0
    %762 = vmatprep.subr.mxu0 0.0
    %763 = vmatpush1.msra.mxu0 0.0
    %764 = vmatprep.subr.mxu0 0.0
    %765 = vmatpush1.msra.mxu0 0.0
    %766 = vmatprep.subr.mxu0 0.0
    %767 = vmatpush1.msra.mxu0 0.0
    %768 = vmatprep.subr.mxu0 0.0
    %769 = vmatpush1.msra.mxu0 0.0
    %770 = vmatprep.subr.mxu0 0.0
    %771 = vmatpush1.msra.mxu0 0.0
    %772 = vmatprep.subr.mxu0 0.0
    %773 = vmatpush1.msra.mxu0 0.0
    %774 = vmatprep.subr.mxu0 0.0
    %775 = vmatpush1.msra.mxu0 0.0
    %776 = vmatprep.subr.mxu0 0.0
    %777 = vmatpush1.msra.mxu0 0.0
    %778 = vmatprep.subr.mxu0 0.0
    %779 = vmatpush1.msra.mxu0 0.0
    %780 = vmatprep.subr.mxu0 0.0
    %781 = vmatpush1.msra.mxu0 0.0
    %782 = vmatprep.subr.mxu0 0.0
    %783 = vmatpush1.msra.mxu0 0.0
    %784 = vmatprep.subr.mxu0 0.0
    %785 = vmatpush1.msra.mxu0 0.0
    %786 = vmatprep.subr.mxu0 0.0
    %787 = vmatpush1.msra.mxu0 0.0
    %788 = vmatprep.subr.mxu0 0.0
    %789 = vmatpush1.msra.mxu0 0.0
    %790 = vmatprep.subr.mxu0 0.0
    %791 = vmatpush1.msra.mxu0 0.0
    %792 = vmatprep.mubr.f32.mxu0 0.0
    %793 = vmatmul.mubr.f32.gmra.mrb[0].mxu0 %v726
    %v794 = vpop.f32.mrb[0].mxu0
    %v795 = vadd.f32 %v724, %v794
    %v796 = vpop.f32.mrb[0].mxu0
    %797 = vdwg.mxu0
    %798 = vst [vmem:[#allocation2] sm:$0x1] %v795
    // Predicated region
    $region14: #{tpu_custom_call.1} parent=1 // pred_check
      _
    $region15: #{tpu_custom_call.1} parent=1 // pred_check_branch
      %800 = sbr.rel (0) target = $region17
    $region16: #{tpu_custom_call.1} parent=1 // pred_region
      %s802 = ssub.s32 16, 16
      %803 = vsyncadd [#allocation3], %s802
      %s805 = sshll.u32 [#allocation2], 4
      %s806 = int_to_ptr.vmem [resolvable:$true] %s805
      %808 = dma.vmem_to_hbm [thread:$0]  %s806, 16, %s3, [#allocation3]
    $region17: #{tpu_custom_call.1} parent=1 // pred_fallthru
      _
    // Predicated region
    $region18: #{tpu_custom_call.1} parent=1 // pred_check
      _
    $region19: #{tpu_custom_call.1} parent=1 // pred_check_branch
      %810 = sbr.rel (0) target = $region21
    $region20: #{tpu_custom_call.1} parent=1 // pred_region
      %811 = dma.done [#allocation3], 16
    $region21: #{tpu_custom_call.1} parent=1 // pred_fallthru
      _
    %812 = vsyncpa [#allocation3], 1

</llo_original>
